<compile_context>
chip_gen: v5e
topology: v5e:2x2
jax: 0.10.0
libtpu: 0.0.40
codegen_flags: <defaults>
</compile_context>

<pallas_src>
import functools

import jax
import jax.numpy as jnp
from jax.experimental import pallas as pl
from jax.experimental.pallas import tpu as pltpu


def _dma_identity_kernel(num_chunks, chunk, x_hbm, o_hbm, sems):
    """Copy x_hbm -> o_hbm with `num_chunks` concurrent HBM->HBM DMAs."""
    if num_chunks == 1:
        cp = pltpu.make_async_copy(x_hbm, o_hbm, sems.at[0])
        cp.start()
        cp.wait()
        return
    # Start every chunk's DMA first (multiple outstanding DMAs), then wait.
    copies = []
    for c in range(num_chunks):
        sl = pl.ds(c * chunk, chunk)  # static start/size per chunk
        cp = pltpu.make_async_copy(x_hbm.at[sl], o_hbm.at[sl], sems.at[c])
        cp.start()
        copies.append(cp)
    for cp in copies:
        cp.wait()


def _choose_num_chunks(n_elems, itemsize, max_chunks=8, min_chunk_bytes=1 << 20):
    """Largest power-of-two chunk count (<= max_chunks) that divides n and
    keeps every chunk >= min_chunk_bytes.  Falls back to 1 (whole-array DMA)."""
    total_bytes = n_elems * itemsize
    nc = max_chunks
    while nc > 1 and (n_elems % nc != 0 or total_bytes // nc < min_chunk_bytes):
        nc //= 2
    return nc


@jax.jit
def identity(x):
    """Pallas identity: returns a copy of x with identical shape/dtype."""
    n = x.size
    if n == 0:                      # degenerate empty tensor
        return x

    itemsize = jnp.dtype(x.dtype).itemsize
    nc = _choose_num_chunks(n, itemsize)

    if nc == 1:
        # Single DMA of the whole array in its original shape — no reshape,
        # no padding, works for any shape/dtype/size.
        return pl.pallas_call(
            functools.partial(_dma_identity_kernel, 1, n),
            out_shape=jax.ShapeDtypeStruct(x.shape, x.dtype),
            in_specs=[pl.BlockSpec(memory_space=pl.ANY)],
            out_specs=pl.BlockSpec(memory_space=pl.ANY),
            scratch_shapes=[pltpu.SemaphoreType.DMA((1,))],
        )(x)

    # Large, evenly divisible tensor: flat 1-D view (bitcast under jit for a
    # contiguous row-major array — no extra HBM pass) split into `nc` chunks.
    chunk = n // nc
    flat = x.reshape(-1)
    out_flat = pl.pallas_call(
        functools.partial(_dma_identity_kernel, nc, chunk),
        out_shape=jax.ShapeDtypeStruct((n,), x.dtype),
        in_specs=[pl.BlockSpec(memory_space=pl.ANY)],
        out_specs=pl.BlockSpec(memory_space=pl.ANY),
        scratch_shapes=[pltpu.SemaphoreType.DMA((nc,))],
    )(flat)
    return out_flat.reshape(x.shape)


if __name__ == "__main__":
    key = jax.random.PRNGKey(0)
    x = jax.random.normal(key, (2, 4, 16, 16), dtype=jnp.float32)
    y = identity(x)
    jax.block_until_ready(y)
    assert y.shape == x.shape and y.dtype == x.dtype
    assert bool(jnp.all(y == x))
    print("KERNEL_OK")
</pallas_src>

<mosaic_0001>
module attributes {stable_mosaic.version = 11 : i64} {
  func.func @_dma_identity_kernel(%arg0: memref<2x4x16x16xf32, #tpu.memory_space<any>>, %arg1: memref<2x4x16x16xf32, #tpu.memory_space<any>>, %arg2: memref<1x!tpu.dma_semaphore, #tpu.memory_space<semaphore_mem>>) attributes {dimension_semantics = [], scalar_prefetch = 0 : i64, scratch_operands = 1 : i64, tpu.core_type = #tpu.core_type<tc>} {
    %c0_i32 = arith.constant 0 : i32
    %0 = tpu.memref_slice %arg2[%c0_i32] : memref<1x!tpu.dma_semaphore, #tpu.memory_space<semaphore_mem>> -> memref<1x!tpu.dma_semaphore, #tpu.memory_space<semaphore_mem>>
    %1 = tpu.memref_squeeze %0 : memref<1x!tpu.dma_semaphore, #tpu.memory_space<semaphore_mem>> -> memref<!tpu.dma_semaphore, #tpu.memory_space<semaphore_mem>>
    tpu.enqueue_dma source(%arg0 : memref<2x4x16x16xf32, #tpu.memory_space<any>>) target(%arg1 : memref<2x4x16x16xf32, #tpu.memory_space<any>>) target_semaphore(%1 : memref<!tpu.dma_semaphore, #tpu.memory_space<semaphore_mem>>)
    %c0_i32_0 = arith.constant 0 : i32
    %2 = tpu.memref_slice %arg2[%c0_i32_0] : memref<1x!tpu.dma_semaphore, #tpu.memory_space<semaphore_mem>> -> memref<1x!tpu.dma_semaphore, #tpu.memory_space<semaphore_mem>>
    %3 = tpu.memref_squeeze %2 : memref<1x!tpu.dma_semaphore, #tpu.memory_space<semaphore_mem>> -> memref<!tpu.dma_semaphore, #tpu.memory_space<semaphore_mem>>
    tpu.wait_dma2 semaphore(%3 : memref<!tpu.dma_semaphore, #tpu.memory_space<semaphore_mem>>) src(%arg0 : memref<2x4x16x16xf32, #tpu.memory_space<any>>) dst(%arg1 : memref<2x4x16x16xf32, #tpu.memory_space<any>>)
    return
  }
}

</mosaic_0001>

<llo_original>
// kernel: identity.1
$region0: #{identity.1}
  #allocation0 [shape = 'u32[]', space=smem, size = 0x4, offset = 0x4, fixed_abs, tag = 'smem constant byte address 0x4 - core index']
  #allocation1 [shape = 'u32[72,128]{1,0:T(1,128)}', space=vmem, size = 0x9000, scoped, tag = 'internal scratch']
  #allocation2 [shape = 's32[1]{0}', space=sflag, size = 0x4, scoped, tag = 'scratch operand']
  #allocation3 [shape = 's32[]', space=sflag, size = 0x4, offset = 0, fixed_abs, tag = 'sflag constant byte address 0x0 - dummy sync flag']
  #allocation4 [shape = 'u32[0]{0}', space=smem, size = 0, offset = 0, fixed_abs, tag = 'smem constant byte address 0x0 - null']
  %s0 = inlined_call_operand.hbm [shape: f32[2,4,16,16], index: 0, kind: input, shape index: {}]
  %s1 = inlined_call_operand.hbm [shape: f32[2,4,16,16], index: 1, kind: output, shape index: {}]
  %s2 = sld [smem:[#allocation0]]
  $region2: #{identity.1} parent=0
    _
  %s4 = ssub.s32 1, %s2
  %s5 = scalar_select 0, %s4, %s2
  %s7 = sshll.u32 1, 14
  %s8 = sxor.u32 4294967295, %s7
  %s10 = sshll.u32 %s0, 4
  %s11 = int_to_ptr.hbm [resolvable:$true] %s10
  %s12 = sshll.u32 %s1, 4
  %s13 = int_to_ptr.hbm [resolvable:$true] %s12
  %16 = dma.general %s11, 2048, %s13, [#allocation2], [#allocation3], [#allocation4], 0, 0
  %s17 = smul.u32 2, 4
  %s18 = smul.u32 %s17, 16
  %s19 = smul.u32 %s18, 1
  %s20 = sshll.u32 %s19, 4
  %21 = dma.done [#allocation2], %s20
  %22 = vsyncmov [#allocation2]
  %s23 = vpop.sfrf %22
  %p24 = scmp.eq.s32.totalorder %s23, 0
  %p25 = pneg %p24
  %27 = shalt.err (%p25)

</llo_original>
